<compile_context>
chip_gen: v7x
topology: tpu7x:2x2x1
jax: 0.10.0
libtpu: 0.0.40
codegen_flags: <defaults>
</compile_context>

<pallas_src>
import numpy as np
import jax
import jax.numpy as jnp
from jax import lax
from jax.experimental import pallas as pl
from jax.experimental.pallas import tpu as pltpu

B, CIN, H, W = 2, 3, 6, 6
COUT = 32
KH = KW = 3
HP, WP = H // 2, W // 2            # 3, 3 after MaxPool2d(2)
NPOOL = HP * WP                    # 9 pooled spatial positions
FEAT = COUT * NPOOL                # 288 = fc1 in_features
HID = 128
NCLS = 10
KDIM = KH * KW * CIN               # 27 im2col features per position
KPAD = 32                          # per-position patch block padded to 32
KBIG = 384                         # 9*32 = 288 padded to 3 full lane tiles
NPAD = 128                         # lane-dense final store width
NOFF = 4                           # 2x2 pool-window offsets


def _build_patch_indices():
    """(4*B, KBIG) int32 gather map into the flattened zero-padded NCHW input.

    Row  r = q*B + b      (q = dy*2+dx pool-window offset, b = batch)
    Col  c = s*KPAD + k   (s = py*3+px pooled position, k = (ky*3+kx)*CIN+ci)
    Padding columns point at flat index 0, a guaranteed-zero element of the
    padded input (h == 0 is a padding row).
    """
    idx_nchw = np.arange(B * CIN * (H + 2) * (W + 2), dtype=np.int32).reshape(
        B, CIN, H + 2, W + 2)
    idx_nhwc = np.transpose(idx_nchw, (0, 2, 3, 1))                   # (B,8,8,CIN)
    patches = np.stack(
        [idx_nhwc[:, ky:ky + H, kx:kx + W, :] for ky in range(KH) for kx in range(KW)],
        axis=3,
    ).reshape(B, H, W, KDIM)                                          # [b,oy,ox,k]
    patches = patches.reshape(B, HP, 2, WP, 2, KDIM)                  # [b,py,dy,px,dx,k]
    patches = np.transpose(patches, (2, 4, 0, 1, 3, 5))               # [dy,dx,b,py,px,k]
    patches = patches.reshape(NOFF * B, NPOOL, KDIM)                  # [q*B+b, s, k]
    idx = np.zeros((NOFF * B, KBIG), dtype=np.int32)                  # 0 -> zero elem
    for s in range(NPOOL):
        idx[:, s * KPAD: s * KPAD + KDIM] = patches[:, s, :]
    return idx


PATCH_IDX = _build_patch_indices()


# ---------------------------------------------------------------------------
# Single fused kernel: conv(3x3,pad=1)+ReLU -> maxpool(2x2) -> fc1+ReLU -> fc2
#   p_ref   : (8, 384)   patch slab; rows = pool-offset-major (q*B + b)
#   wblk_ref: (384, 384) block-diagonal conv weight (one (32,32) block per s)
#   bc_ref  : (1, 384)   conv bias tiled per pooled position (zeros in pad cols)
#   w1_ref  : (384, 128) fc1 weight, NCHW-flatten permutation folded in, K padded
#   b1_ref  : (1, 128)
#   w2_ref  : (128, 128) fc2 weight zero-padded to 128 output columns
#   b2_ref  : (1, 128)
#   o_ref   : (B, 128)   lane-dense output; wrapper keeps [:, :NCLS]
# ---------------------------------------------------------------------------
def net3_kernel(p_ref, wblk_ref, bc_ref, w1_ref, b1_ref, w2_ref, b2_ref, o_ref):
    # one conv matmul: column s*32+co is the conv output at pooled position s
    c = jnp.dot(p_ref[...], wblk_ref[...], preferred_element_type=jnp.float32)  # (8,384)
    # 2x2 max-pool = elementwise max over the four contiguous 2-row offset slabs
    pooled = jnp.maximum(jnp.maximum(c[0:B], c[B:2 * B]),
                         jnp.maximum(c[2 * B:3 * B], c[3 * B:4 * B]))            # (B,384)
    # bias-add and ReLU commute with the max over the 4 window offsets
    pooled = jnp.maximum(pooled + bc_ref[...], 0.0)
    h = jnp.maximum(
        jnp.dot(pooled, w1_ref[...], preferred_element_type=jnp.float32) + b1_ref[...],
        0.0)                                                                     # (B,128)
    o_ref[...] = (
        jnp.dot(h, w2_ref[...], preferred_element_type=jnp.float32) + b2_ref[...])


def prepare_params(params):
    """One-time weight re-layout so the kernel is three plain 2-D matmuls."""
    w_conv, b_conv, w_fc1, b_fc1, w_fc2, b_fc2 = params
    # conv weight (ky,kx,ci,co) -> (27,32), pad K to 32, replicate block-diagonally
    wc = jnp.pad(w_conv.reshape(KDIM, COUT), ((0, KPAD - KDIM), (0, 0)))         # (32,32)
    wblk = jnp.kron(jnp.eye(NPOOL, dtype=jnp.float32), wc)                       # (288,288)
    wblk = jnp.pad(wblk, ((0, KBIG - NPOOL * KPAD), (0, KBIG - NPOOL * KPAD)))   # (384,384)
    bc = jnp.pad(jnp.tile(b_conv, NPOOL), (0, KBIG - NPOOL * COUT)).reshape(1, KBIG)
    # fc1: PyTorch flatten feature index is co*9+s; kernel lane index is s*32+co
    w1 = jnp.transpose(w_fc1.reshape(COUT, NPOOL, HID), (1, 0, 2)).reshape(FEAT, HID)
    w1 = jnp.pad(w1, ((0, KBIG - FEAT), (0, 0)))                                 # (384,128)
    b1 = b_fc1.reshape(1, HID)
    # fc2: lane-dense final store, pad output width 10 -> 128
    w2 = jnp.pad(w_fc2, ((0, 0), (0, NPAD - NCLS)))                              # (128,128)
    b2 = jnp.pad(b_fc2.reshape(1, NCLS), ((0, 0), (0, NPAD - NCLS)))
    return (wblk, bc, w1, b1, w2, b2)


@jax.jit
def net3_forward(x_nchw, prep):
    """x_nchw: (B, 3, 6, 6) float32 -> (B, 10) float32."""
    wblk, bc, w1, b1, w2, b2 = prep
    # pad + one constant-index gather builds the (8, 384) patch slab
    xp = jnp.pad(x_nchw, ((0, 0), (0, 0), (1, 1), (1, 1)))       # (B,3,8,8), border = 0
    p = xp.reshape(-1)[PATCH_IDX]                                 # (8, 384)

    vmem = pl.BlockSpec(memory_space=pltpu.MemorySpace.VMEM)
    out = pl.pallas_call(
        net3_kernel,
        out_shape=jax.ShapeDtypeStruct((B, NPAD), jnp.float32),
        in_specs=[vmem] * 7,
        out_specs=vmem,
    )(p, wblk, bc, w1, b1, w2, b2)
    return out[:, :NCLS]


def init_params():
    key = jax.random.PRNGKey(42)
    k = jax.random.split(key, 6)
    w_conv = jax.random.normal(k[0], (KH, KW, CIN, COUT), jnp.float32) * 0.1
    b_conv = jax.random.normal(k[1], (COUT,), jnp.float32) * 0.1
    # x @ W layout (in, out); PyTorch nn.Linear stores (out, in) -> transpose at
    # prep time if porting checkpoint weights.
    w_fc1 = jax.random.normal(k[2], (FEAT, HID), jnp.float32) * 0.05
    b_fc1 = jax.random.normal(k[3], (HID,), jnp.float32) * 0.05
    w_fc2 = jax.random.normal(k[4], (HID, NCLS), jnp.float32) * 0.05
    b_fc2 = jax.random.normal(k[5], (NCLS,), jnp.float32) * 0.05
    return (w_conv, b_conv, w_fc1, b_fc1, w_fc2, b_fc2)


def net3_reference(x_nchw, params):
    """Pure-JAX reference (XLA conv/pool, HIGHEST precision) matching the PyTorch module."""
    w_conv, b_conv, w_fc1, b_fc1, w_fc2, b_fc2 = params
    w_oihw = jnp.transpose(w_conv, (3, 2, 0, 1))
    conv = lax.conv_general_dilated(
        x_nchw, w_oihw, window_strides=(1, 1), padding=((1, 1), (1, 1)),
        dimension_numbers=("NCHW", "OIHW", "NCHW"),
        precision=lax.Precision.HIGHEST)
    conv = jnp.maximum(conv + b_conv.reshape(1, COUT, 1, 1), 0.0)
    pooled = jnp.max(conv.reshape(B, COUT, HP, 2, WP, 2), axis=(3, 5))
    flat = pooled.reshape(B, FEAT)                                # NCHW flatten order
    h = jnp.maximum(jnp.dot(flat, w_fc1, precision=lax.Precision.HIGHEST) + b_fc1, 0.0)
    return jnp.dot(h, w_fc2, precision=lax.Precision.HIGHEST) + b_fc2


if __name__ == "__main__":
    params = init_params()
    prep = jax.block_until_ready(prepare_params(params))   # one-time weight re-layout
    x = jax.random.normal(jax.random.PRNGKey(0), (B, CIN, H, W), jnp.float32)

    out = jax.block_until_ready(net3_forward(x, prep))
    ref = jax.block_until_ready(net3_reference(x, params))

    assert out.shape == (B, NCLS), out.shape
    assert jnp.allclose(out, ref, atol=1e-3, rtol=1e-3), (out, ref)
    print("KERNEL_OK")
</pallas_src>

<mosaic_0001>
module attributes {stable_mosaic.version = 11 : i64} {
  func.func @net3_kernel(%arg0: memref<8x384xf32, #tpu.memory_space<vmem>>, %arg1: memref<384x384xf32, #tpu.memory_space<vmem>>, %arg2: memref<1x384xf32, #tpu.memory_space<vmem>>, %arg3: memref<384x128xf32, #tpu.memory_space<vmem>>, %arg4: memref<1x128xf32, #tpu.memory_space<vmem>>, %arg5: memref<128x128xf32, #tpu.memory_space<vmem>>, %arg6: memref<1x128xf32, #tpu.memory_space<vmem>>, %arg7: memref<2x128xf32, #tpu.memory_space<vmem>>) attributes {dimension_semantics = [], scalar_prefetch = 0 : i64, scratch_operands = 0 : i64, tpu.core_type = #tpu.core_type<tc>} {
    %c0 = arith.constant 0 : index
    %c0_0 = arith.constant 0 : index
    %0 = vector.load %arg0[%c0, %c0_0] : memref<8x384xf32, #tpu.memory_space<vmem>>, vector<8x384xf32>
    %c0_1 = arith.constant 0 : index
    %c0_2 = arith.constant 0 : index
    %1 = vector.load %arg1[%c0_1, %c0_2] : memref<384x384xf32, #tpu.memory_space<vmem>>, vector<384x384xf32>
    %cst = arith.constant dense<0.000000e+00> : vector<8x384xf32>
    %2 = tpu.matmul %0, %1, %cst {dimension_numbers = #tpu.dot_dimension_numbers<[1], [0], [0], [1], [0, 0, 1, 1], [], []>} : vector<8x384xf32>, vector<384x384xf32>, vector<8x384xf32> -> vector<8x384xf32>
    %3 = vector.extract_strided_slice %2 {offsets = [0, 0], sizes = [2, 384], strides = [1, 1]} : vector<8x384xf32> to vector<2x384xf32>
    %4 = vector.extract_strided_slice %2 {offsets = [2, 0], sizes = [2, 384], strides = [1, 1]} : vector<8x384xf32> to vector<2x384xf32>
    %5 = arith.maximumf %3, %4 : vector<2x384xf32>
    %6 = vector.extract_strided_slice %2 {offsets = [4, 0], sizes = [2, 384], strides = [1, 1]} : vector<8x384xf32> to vector<2x384xf32>
    %7 = vector.extract_strided_slice %2 {offsets = [6, 0], sizes = [2, 384], strides = [1, 1]} : vector<8x384xf32> to vector<2x384xf32>
    %8 = arith.maximumf %6, %7 : vector<2x384xf32>
    %9 = arith.maximumf %5, %8 : vector<2x384xf32>
    %c0_3 = arith.constant 0 : index
    %c0_4 = arith.constant 0 : index
    %10 = vector.load %arg2[%c0_3, %c0_4] : memref<1x384xf32, #tpu.memory_space<vmem>>, vector<1x384xf32>
    %11 = vector.broadcast %10 : vector<1x384xf32> to vector<2x384xf32>
    %12 = arith.addf %9, %11 : vector<2x384xf32>
    %cst_5 = arith.constant 0.000000e+00 : f32
    %13 = vector.broadcast %cst_5 : f32 to vector<2x384xf32>
    %14 = arith.maximumf %12, %13 : vector<2x384xf32>
    %c0_6 = arith.constant 0 : index
    %c0_7 = arith.constant 0 : index
    %15 = vector.load %arg3[%c0_6, %c0_7] : memref<384x128xf32, #tpu.memory_space<vmem>>, vector<384x128xf32>
    %cst_8 = arith.constant dense<0.000000e+00> : vector<2x128xf32>
    %16 = tpu.matmul %14, %15, %cst_8 {dimension_numbers = #tpu.dot_dimension_numbers<[1], [0], [0], [1], [0, 0, 1, 1], [], []>} : vector<2x384xf32>, vector<384x128xf32>, vector<2x128xf32> -> vector<2x128xf32>
    %c0_9 = arith.constant 0 : index
    %c0_10 = arith.constant 0 : index
    %17 = vector.load %arg4[%c0_9, %c0_10] : memref<1x128xf32, #tpu.memory_space<vmem>>, vector<1x128xf32>
    %18 = vector.broadcast %17 : vector<1x128xf32> to vector<2x128xf32>
    %19 = arith.addf %16, %18 : vector<2x128xf32>
    %cst_11 = arith.constant 0.000000e+00 : f32
    %20 = vector.broadcast %cst_11 : f32 to vector<2x128xf32>
    %21 = arith.maximumf %19, %20 : vector<2x128xf32>
    %c0_12 = arith.constant 0 : index
    %c0_13 = arith.constant 0 : index
    %22 = vector.load %arg5[%c0_12, %c0_13] : memref<128x128xf32, #tpu.memory_space<vmem>>, vector<128x128xf32>
    %cst_14 = arith.constant dense<0.000000e+00> : vector<2x128xf32>
    %23 = tpu.matmul %21, %22, %cst_14 {dimension_numbers = #tpu.dot_dimension_numbers<[1], [0], [0], [1], [0, 0, 1, 1], [], []>} : vector<2x128xf32>, vector<128x128xf32>, vector<2x128xf32> -> vector<2x128xf32>
    %c0_15 = arith.constant 0 : index
    %c0_16 = arith.constant 0 : index
    %24 = vector.load %arg6[%c0_15, %c0_16] : memref<1x128xf32, #tpu.memory_space<vmem>>, vector<1x128xf32>
    %25 = vector.broadcast %24 : vector<1x128xf32> to vector<2x128xf32>
    %26 = arith.addf %23, %25 : vector<2x128xf32>
    %c0_17 = arith.constant 0 : index
    %c0_18 = arith.constant 0 : index
    %27 = vector.load %arg7[%c0_17, %c0_18] : memref<2x128xf32, #tpu.memory_space<vmem>>, vector<2x128xf32>
    tpu.vector_store %arg7[%c0_17, %c0_18], %26 {strides = array<i32>} : memref<2x128xf32, #tpu.memory_space<vmem>>, vector<2x128xf32>,
    return
  }
}

</mosaic_0001>

<llo_original>
// kernel: net3_forward.1
$region0: #{net3_forward.1}
  #allocation0 [shape = 'u32[]', space=smem, size = 0x4, offset = 0x4, fixed_abs, tag = 'smem constant byte address 0x4 - core index']
  #allocation1 [shape = 'u32[144,128]{1,0:T(1,128)}', space=vmem, size = 0x12000, scoped, tag = 'internal scratch']
  %s0 = inlined_call_operand.vmem [shape: f32[8,384], index: 0, kind: input, shape index: {}]
  %s1 = inlined_call_operand.vmem [shape: f32[384,384], index: 1, kind: input, shape index: {}]
  %s2 = inlined_call_operand.vmem [shape: f32[1,384], index: 2, kind: input, shape index: {}]
  %s3 = inlined_call_operand.vmem [shape: f32[384,128], index: 3, kind: input, shape index: {}]
  %s4 = inlined_call_operand.vmem [shape: f32[1,128], index: 4, kind: input, shape index: {}]
  %s5 = inlined_call_operand.vmem [shape: f32[128,128], index: 5, kind: input, shape index: {}]
  %s6 = inlined_call_operand.vmem [shape: f32[1,128], index: 6, kind: input, shape index: {}]
  %s7 = inlined_call_operand.hbm [shape: f32[2,128], index: 7, kind: output, shape index: {}]
  %s8 = sld [smem:[#allocation0]]
  $region38: #{net3_forward.1} parent=0
    _
  %s10 = ssub.s32 1, %s8
  %s11 = scalar_select 0, %s10, %s8
  $region1: #{net3_forward.1} parent=0
    #allocation2 [shape = 'u8[1024]{0}', space=vmem, size = 0x400, scoped, tag = 'output window, operand 0, single buffered']
    #allocation3 [shape = 's32[1]{0}', space=sflag, size = 0x4, scoped, tag = 'scoped memory for net3_forward.1']
    %12 = vsyncpa [#allocation3], 0
    // Predicated region
    $region2: #{net3_forward.1} parent=1 // pred_check
      _
    $region3: #{net3_forward.1} parent=1 // pred_check_branch
      %14 = sbr.rel (0) target = $region5
    $region4: #{net3_forward.1} parent=1 // pred_region
      _
    $region5: #{net3_forward.1} parent=1 // pred_fallthru
      _
    // Predicated region
    $region6: #{net3_forward.1} parent=1 // pred_check
      _
    $region7: #{net3_forward.1} parent=1 // pred_check_branch
      %16 = sbr.rel (0) target = $region9
    $region8: #{net3_forward.1} parent=1 // pred_region
      _
    $region9: #{net3_forward.1} parent=1 // pred_fallthru
      _
    // Predicated region
    $region10: #{net3_forward.1} parent=1 // pred_check
      _
    $region11: #{net3_forward.1} parent=1 // pred_check_branch
      %18 = sbr.rel (0) target = $region13
    $region12: #{net3_forward.1} parent=1 // pred_region
      _
    $region13: #{net3_forward.1} parent=1 // pred_fallthru
      _
    // Predicated region
    $region14: #{net3_forward.1} parent=1 // pred_check
      _
    $region15: #{net3_forward.1} parent=1 // pred_check_branch
      %20 = sbr.rel (0) target = $region17
    $region16: #{net3_forward.1} parent=1 // pred_region
      _
    $region17: #{net3_forward.1} parent=1 // pred_fallthru
      _
    // Predicated region
    $region18: #{net3_forward.1} parent=1 // pred_check
      _
    $region19: #{net3_forward.1} parent=1 // pred_check_branch
      %22 = sbr.rel (0) target = $region21
    $region20: #{net3_forward.1} parent=1 // pred_region
      _
    $region21: #{net3_forward.1} parent=1 // pred_fallthru
      _
    // Predicated region
    $region22: #{net3_forward.1} parent=1 // pred_check
      _
    $region23: #{net3_forward.1} parent=1 // pred_check_branch
      %24 = sbr.rel (0) target = $region25
    $region24: #{net3_forward.1} parent=1 // pred_region
      _
    $region25: #{net3_forward.1} parent=1 // pred_fallthru
      _
    // Predicated region
    $region26: #{net3_forward.1} parent=1 // pred_check
      _
    $region27: #{net3_forward.1} parent=1 // pred_check_branch
      %26 = sbr.rel (0) target = $region29
    $region28: #{net3_forward.1} parent=1 // pred_region
      _
    $region29: #{net3_forward.1} parent=1 // pred_fallthru
      _
    %v27 = vld [vmem:[%s0] sm:$0xff]
    %v28 = vld [vmem:[%s0 + $0x8] sm:$0xff]
    %v29 = vld [vmem:[%s0 + $0x10] sm:$0xff]
    %v30 = vld [vmem:[%s1] sm:$0xff]
    %v31 = vld [vmem:[%s1 + $0x8] sm:$0xff]
    %v32 = vld [vmem:[%s1 + $0x10] sm:$0xff]
    %v33 = vld [vmem:[%s1 + $0x18] sm:$0xff]
    %v34 = vld [vmem:[%s1 + $0x20] sm:$0xff]
    %v35 = vld [vmem:[%s1 + $0x28] sm:$0xff]
    %v36 = vld [vmem:[%s1 + $0x30] sm:$0xff]
    %v37 = vld [vmem:[%s1 + $0x38] sm:$0xff]
    %v38 = vld [vmem:[%s1 + $0x40] sm:$0xff]
    %v39 = vld [vmem:[%s1 + $0x48] sm:$0xff]
    %v40 = vld [vmem:[%s1 + $0x50] sm:$0xff]
    %v41 = vld [vmem:[%s1 + $0x58] sm:$0xff]
    %v42 = vld [vmem:[%s1 + $0x60] sm:$0xff]
    %v43 = vld [vmem:[%s1 + $0x68] sm:$0xff]
    %v44 = vld [vmem:[%s1 + $0x70] sm:$0xff]
    %v45 = vld [vmem:[%s1 + $0x78] sm:$0xff]
    %v46 = vld [vmem:[%s1 + $0x80] sm:$0xff]
    %v47 = vld [vmem:[%s1 + $0x88] sm:$0xff]
    %v48 = vld [vmem:[%s1 + $0x90] sm:$0xff]
    %v49 = vld [vmem:[%s1 + $0x98] sm:$0xff]
    %v50 = vld [vmem:[%s1 + $0xa0] sm:$0xff]
    %v51 = vld [vmem:[%s1 + $0xa8] sm:$0xff]
    %v52 = vld [vmem:[%s1 + $0xb0] sm:$0xff]
    %v53 = vld [vmem:[%s1 + $0xb8] sm:$0xff]
    %v54 = vld [vmem:[%s1 + $0xc0] sm:$0xff]
    %v55 = vld [vmem:[%s1 + $0xc8] sm:$0xff]
    %v56 = vld [vmem:[%s1 + $0xd0] sm:$0xff]
    %v57 = vld [vmem:[%s1 + $0xd8] sm:$0xff]
    %v58 = vld [vmem:[%s1 + $0xe0] sm:$0xff]
    %v59 = vld [vmem:[%s1 + $0xe8] sm:$0xff]
    %v60 = vld [vmem:[%s1 + $0xf0] sm:$0xff]
    %v61 = vld [vmem:[%s1 + $0xf8] sm:$0xff]
    %v62 = vld [vmem:[%s1 + $0x100] sm:$0xff]
    %v63 = vld [vmem:[%s1 + $0x108] sm:$0xff]
    %v64 = vld [vmem:[%s1 + $0x110] sm:$0xff]
    %v65 = vld [vmem:[%s1 + $0x118] sm:$0xff]
    %v66 = vld [vmem:[%s1 + $0x120] sm:$0xff]
    %v67 = vld [vmem:[%s1 + $0x128] sm:$0xff]
    %v68 = vld [vmem:[%s1 + $0x130] sm:$0xff]
    %v69 = vld [vmem:[%s1 + $0x138] sm:$0xff]
    %v70 = vld [vmem:[%s1 + $0x140] sm:$0xff]
    %v71 = vld [vmem:[%s1 + $0x148] sm:$0xff]
    %v72 = vld [vmem:[%s1 + $0x150] sm:$0xff]
    %v73 = vld [vmem:[%s1 + $0x158] sm:$0xff]
    %v74 = vld [vmem:[%s1 + $0x160] sm:$0xff]
    %v75 = vld [vmem:[%s1 + $0x168] sm:$0xff]
    %v76 = vld [vmem:[%s1 + $0x170] sm:$0xff]
    %v77 = vld [vmem:[%s1 + $0x178] sm:$0xff]
    %v78 = vld [vmem:[%s1 + $0x180] sm:$0xff]
    %v79 = vld [vmem:[%s1 + $0x188] sm:$0xff]
    %v80 = vld [vmem:[%s1 + $0x190] sm:$0xff]
    %v81 = vld [vmem:[%s1 + $0x198] sm:$0xff]
    %v82 = vld [vmem:[%s1 + $0x1a0] sm:$0xff]
    %v83 = vld [vmem:[%s1 + $0x1a8] sm:$0xff]
    %v84 = vld [vmem:[%s1 + $0x1b0] sm:$0xff]
    %v85 = vld [vmem:[%s1 + $0x1b8] sm:$0xff]
    %v86 = vld [vmem:[%s1 + $0x1c0] sm:$0xff]
    %v87 = vld [vmem:[%s1 + $0x1c8] sm:$0xff]
    %v88 = vld [vmem:[%s1 + $0x1d0] sm:$0xff]
    %v89 = vld [vmem:[%s1 + $0x1d8] sm:$0xff]
    %v90 = vld [vmem:[%s1 + $0x1e0] sm:$0xff]
    %v91 = vld [vmem:[%s1 + $0x1e8] sm:$0xff]
    %v92 = vld [vmem:[%s1 + $0x1f0] sm:$0xff]
    %v93 = vld [vmem:[%s1 + $0x1f8] sm:$0xff]
    %v94 = vld [vmem:[%s1 + $0x200] sm:$0xff]
    %v95 = vld [vmem:[%s1 + $0x208] sm:$0xff]
    %v96 = vld [vmem:[%s1 + $0x210] sm:$0xff]
    %v97 = vld [vmem:[%s1 + $0x218] sm:$0xff]
    %v98 = vld [vmem:[%s1 + $0x220] sm:$0xff]
    %v99 = vld [vmem:[%s1 + $0x228] sm:$0xff]
    %v100 = vld [vmem:[%s1 + $0x230] sm:$0xff]
    %v101 = vld [vmem:[%s1 + $0x238] sm:$0xff]
    %v102 = vld [vmem:[%s1 + $0x240] sm:$0xff]
    %v103 = vld [vmem:[%s1 + $0x248] sm:$0xff]
    %v104 = vld [vmem:[%s1 + $0x250] sm:$0xff]
    %v105 = vld [vmem:[%s1 + $0x258] sm:$0xff]
    %v106 = vld [vmem:[%s1 + $0x260] sm:$0xff]
    %v107 = vld [vmem:[%s1 + $0x268] sm:$0xff]
    %v108 = vld [vmem:[%s1 + $0x270] sm:$0xff]
    %v109 = vld [vmem:[%s1 + $0x278] sm:$0xff]
    %v110 = vld [vmem:[%s1 + $0x280] sm:$0xff]
    %v111 = vld [vmem:[%s1 + $0x288] sm:$0xff]
    %v112 = vld [vmem:[%s1 + $0x290] sm:$0xff]
    %v113 = vld [vmem:[%s1 + $0x298] sm:$0xff]
    %v114 = vld [vmem:[%s1 + $0x2a0] sm:$0xff]
    %v115 = vld [vmem:[%s1 + $0x2a8] sm:$0xff]
    %v116 = vld [vmem:[%s1 + $0x2b0] sm:$0xff]
    %v117 = vld [vmem:[%s1 + $0x2b8] sm:$0xff]
    %v118 = vld [vmem:[%s1 + $0x2c0] sm:$0xff]
    %v119 = vld [vmem:[%s1 + $0x2c8] sm:$0xff]
    %v120 = vld [vmem:[%s1 + $0x2d0] sm:$0xff]
    %v121 = vld [vmem:[%s1 + $0x2d8] sm:$0xff]
    %v122 = vld [vmem:[%s1 + $0x2e0] sm:$0xff]
    %v123 = vld [vmem:[%s1 + $0x2e8] sm:$0xff]
    %v124 = vld [vmem:[%s1 + $0x2f0] sm:$0xff]
    %v125 = vld [vmem:[%s1 + $0x2f8] sm:$0xff]
    %v126 = vld [vmem:[%s1 + $0x300] sm:$0xff]
    %v127 = vld [vmem:[%s1 + $0x308] sm:$0xff]
    %v128 = vld [vmem:[%s1 + $0x310] sm:$0xff]
    %v129 = vld [vmem:[%s1 + $0x318] sm:$0xff]
    %v130 = vld [vmem:[%s1 + $0x320] sm:$0xff]
    %v131 = vld [vmem:[%s1 + $0x328] sm:$0xff]
    %v132 = vld [vmem:[%s1 + $0x330] sm:$0xff]
    %v133 = vld [vmem:[%s1 + $0x338] sm:$0xff]
    %v134 = vld [vmem:[%s1 + $0x340] sm:$0xff]
    %v135 = vld [vmem:[%s1 + $0x348] sm:$0xff]
    %v136 = vld [vmem:[%s1 + $0x350] sm:$0xff]
    %v137 = vld [vmem:[%s1 + $0x358] sm:$0xff]
    %v138 = vld [vmem:[%s1 + $0x360] sm:$0xff]
    %v139 = vld [vmem:[%s1 + $0x368] sm:$0xff]
    %v140 = vld [vmem:[%s1 + $0x370] sm:$0xff]
    %v141 = vld [vmem:[%s1 + $0x378] sm:$0xff]
    %v142 = vld [vmem:[%s1 + $0x380] sm:$0xff]
    %v143 = vld [vmem:[%s1 + $0x388] sm:$0xff]
    %v144 = vld [vmem:[%s1 + $0x390] sm:$0xff]
    %v145 = vld [vmem:[%s1 + $0x398] sm:$0xff]
    %v146 = vld [vmem:[%s1 + $0x3a0] sm:$0xff]
    %v147 = vld [vmem:[%s1 + $0x3a8] sm:$0xff]
    %v148 = vld [vmem:[%s1 + $0x3b0] sm:$0xff]
    %v149 = vld [vmem:[%s1 + $0x3b8] sm:$0xff]
    %v150 = vld [vmem:[%s1 + $0x3c0] sm:$0xff]
    %v151 = vld [vmem:[%s1 + $0x3c8] sm:$0xff]
    %v152 = vld [vmem:[%s1 + $0x3d0] sm:$0xff]
    %v153 = vld [vmem:[%s1 + $0x3d8] sm:$0xff]
    %v154 = vld [vmem:[%s1 + $0x3e0] sm:$0xff]
    %v155 = vld [vmem:[%s1 + $0x3e8] sm:$0xff]
    %v156 = vld [vmem:[%s1 + $0x3f0] sm:$0xff]
    %v157 = vld [vmem:[%s1 + $0x3f8] sm:$0xff]
    %v158 = vld [vmem:[%s1 + $0x400] sm:$0xff]
    %v159 = vld [vmem:[%s1 + $0x408] sm:$0xff]
    %v160 = vld [vmem:[%s1 + $0x410] sm:$0xff]
    %v161 = vld [vmem:[%s1 + $0x418] sm:$0xff]
    %v162 = vld [vmem:[%s1 + $0x420] sm:$0xff]
    %v163 = vld [vmem:[%s1 + $0x428] sm:$0xff]
    %v164 = vld [vmem:[%s1 + $0x430] sm:$0xff]
    %v165 = vld [vmem:[%s1 + $0x438] sm:$0xff]
    %v166 = vld [vmem:[%s1 + $0x440] sm:$0xff]
    %v167 = vld [vmem:[%s1 + $0x448] sm:$0xff]
    %v168 = vld [vmem:[%s1 + $0x450] sm:$0xff]
    %v169 = vld [vmem:[%s1 + $0x458] sm:$0xff]
    %v170 = vld [vmem:[%s1 + $0x460] sm:$0xff]
    %v171 = vld [vmem:[%s1 + $0x468] sm:$0xff]
    %v172 = vld [vmem:[%s1 + $0x470] sm:$0xff]
    %v173 = vld [vmem:[%s1 + $0x478] sm:$0xff]
    %174 = vmatprep.subr.mxu0 %v31
    %175 = vmatpush1.msra.mxu0 %v30
    %176 = vmatprep.subr.mxu0 %v34
    %177 = vmatpush1.msra.mxu0 %v33
    %178 = vmatprep.subr.mxu0 %v37
    %179 = vmatpush1.msra.mxu0 %v36
    %180 = vmatprep.subr.mxu0 %v40
    %181 = vmatpush1.msra.mxu0 %v39
    %182 = vmatprep.subr.mxu0 %v43
    %183 = vmatpush1.msra.mxu0 %v42
    %184 = vmatprep.subr.mxu0 %v46
    %185 = vmatpush1.msra.mxu0 %v45
    %186 = vmatprep.subr.mxu0 %v49
    %187 = vmatpush1.msra.mxu0 %v48
    %188 = vmatprep.subr.mxu0 %v52
    %189 = vmatpush1.msra.mxu0 %v51
    %190 = vmatprep.subr.mxu0 %v55
    %191 = vmatpush1.msra.mxu0 %v54
    %192 = vmatprep.subr.mxu0 %v58
    %193 = vmatpush1.msra.mxu0 %v57
    %194 = vmatprep.subr.mxu0 %v61
    %195 = vmatpush1.msra.mxu0 %v60
    %196 = vmatprep.subr.mxu0 %v64
    %197 = vmatpush1.msra.mxu0 %v63
    %198 = vmatprep.subr.mxu0 %v67
    %199 = vmatpush1.msra.mxu0 %v66
    %200 = vmatprep.subr.mxu0 %v70
    %201 = vmatpush1.msra.mxu0 %v69
    %202 = vmatprep.subr.mxu0 %v73
    %203 = vmatpush1.msra.mxu0 %v72
    %204 = vmatprep.subr.mxu0 %v76
    %205 = vmatpush1.msra.mxu0 %v75
    %206 = vmatprep.subr.mxu0 %v79
    %207 = vmatpush1.msra.mxu0 %v78
    %208 = vmatprep.subr.mxu0 %v82
    %209 = vmatpush1.msra.mxu0 %v81
    %210 = vmatprep.subr.mxu0 %v85
    %211 = vmatpush1.msra.mxu0 %v84
    %212 = vmatprep.subr.mxu0 %v88
    %213 = vmatpush1.msra.mxu0 %v87
    %214 = vmatprep.subr.mxu0 %v91
    %215 = vmatpush1.msra.mxu0 %v90
    %216 = vmatprep.subr.mxu0 %v94
    %217 = vmatpush1.msra.mxu0 %v93
    %218 = vmatprep.subr.mxu0 %v97
    %219 = vmatpush1.msra.mxu0 %v96
    %220 = vmatprep.subr.mxu0 %v100
    %221 = vmatpush1.msra.mxu0 %v99
    %222 = vmatprep.subr.mxu0 %v103
    %223 = vmatpush1.msra.mxu0 %v102
    %224 = vmatprep.subr.mxu0 %v106
    %225 = vmatpush1.msra.mxu0 %v105
    %226 = vmatprep.subr.mxu0 %v109
    %227 = vmatpush1.msra.mxu0 %v108
    %228 = vmatprep.subr.mxu0 %v112
    %229 = vmatpush1.msra.mxu0 %v111
    %230 = vmatprep.subr.mxu0 %v115
    %231 = vmatpush1.msra.mxu0 %v114
    %232 = vmatprep.subr.mxu0 %v118
    %233 = vmatpush1.msra.mxu0 %v117
    %234 = vmatprep.subr.mxu0 %v121
    %235 = vmatpush1.msra.mxu0 %v120
    %236 = vmatprep.subr.mxu0 %v124
    %237 = vmatpush1.msra.mxu0 %v123
    %238 = vmatprep.mubr.f32.mxu0 %v28
    %239 = vmatmul.mubr.f32.gmra.mrb[0].mxu0 %v27
    %v240 = vpop.f32.mrb[0].mxu0
    %v241 = vadd.f32 0.0, %v240
    %v242 = vpop.f32.mrb[0].mxu0
    %v243 = vadd.f32 0.0, %v242
    %244 = vdwg.mxu0
    %245 = vmatprep.subr.mxu0 %v127
    %246 = vmatpush1.msra.mxu0 %v126
    %247 = vmatprep.subr.mxu0 %v130
    %248 = vmatpush1.msra.mxu0 %v129
    %249 = vmatprep.subr.mxu0 %v133
    %250 = vmatpush1.msra.mxu0 %v132
    %251 = vmatprep.subr.mxu0 %v136
    %252 = vmatpush1.msra.mxu0 %v135
    %253 = vmatprep.subr.mxu0 %v139
    %254 = vmatpush1.msra.mxu0 %v138
    %255 = vmatprep.subr.mxu0 %v142
    %256 = vmatpush1.msra.mxu0 %v141
    %257 = vmatprep.subr.mxu0 %v145
    %258 = vmatpush1.msra.mxu0 %v144
    %259 = vmatprep.subr.mxu0 %v148
    %260 = vmatpush1.msra.mxu0 %v147
    %261 = vmatprep.subr.mxu0 %v151
    %262 = vmatpush1.msra.mxu0 %v150
    %263 = vmatprep.subr.mxu0 %v154
    %264 = vmatpush1.msra.mxu0 %v153
    %265 = vmatprep.subr.mxu0 %v157
    %266 = vmatpush1.msra.mxu0 %v156
    %267 = vmatprep.subr.mxu0 %v160
    %268 = vmatpush1.msra.mxu0 %v159
    %269 = vmatprep.subr.mxu0 %v163
    %270 = vmatpush1.msra.mxu0 %v162
    %271 = vmatprep.subr.mxu0 %v166
    %272 = vmatpush1.msra.mxu0 %v165
    %273 = vmatprep.subr.mxu0 %v169
    %274 = vmatpush1.msra.mxu0 %v168
    %275 = vmatprep.subr.mxu0 %v172
    %276 = vmatpush1.msra.mxu0 %v171
    %277 = vmatprep.subr.mxu0 0.0
    %278 = vmatpush1.msra.mxu0 0.0
    %279 = vmatprep.subr.mxu0 0.0
    %280 = vmatpush1.msra.mxu0 0.0
    %281 = vmatprep.subr.mxu0 0.0
    %282 = vmatpush1.msra.mxu0 0.0
    %283 = vmatprep.subr.mxu0 0.0
    %284 = vmatpush1.msra.mxu0 0.0
    %285 = vmatprep.subr.mxu0 0.0
    %286 = vmatpush1.msra.mxu0 0.0
    %287 = vmatprep.subr.mxu0 0.0
    %288 = vmatpush1.msra.mxu0 0.0
    %289 = vmatprep.subr.mxu0 0.0
    %290 = vmatpush1.msra.mxu0 0.0
    %291 = vmatprep.subr.mxu0 0.0
    %292 = vmatpush1.msra.mxu0 0.0
    %293 = vmatprep.subr.mxu0 0.0
    %294 = vmatpush1.msra.mxu0 0.0
    %295 = vmatprep.subr.mxu0 0.0
    %296 = vmatpush1.msra.mxu0 0.0
    %297 = vmatprep.subr.mxu0 0.0
    %298 = vmatpush1.msra.mxu0 0.0
    %299 = vmatprep.subr.mxu0 0.0
    %300 = vmatpush1.msra.mxu0 0.0
    %301 = vmatprep.subr.mxu0 0.0
    %302 = vmatpush1.msra.mxu0 0.0
    %303 = vmatprep.subr.mxu0 0.0
    %304 = vmatpush1.msra.mxu0 0.0
    %305 = vmatprep.subr.mxu0 0.0
    %306 = vmatpush1.msra.mxu0 0.0
    %307 = vmatprep.subr.mxu0 0.0
    %308 = vmatpush1.msra.mxu0 0.0
    %309 = vmatprep.mubr.f32.mxu0 0.0
    %310 = vmatmul.mubr.f32.gmra.mrb[0].mxu0 %v29
    %v311 = vpop.f32.mrb[0].mxu0
    %v312 = vadd.f32 %v241, %v311
    %v313 = vpop.f32.mrb[0].mxu0
    %v314 = vadd.f32 %v243, %v313
    %315 = vdwg.mxu0
    %316 = vmatprep.subr.mxu0 0.0
    %317 = vmatpush1.msra.mxu0 %v32
    %318 = vmatprep.subr.mxu0 0.0
    %319 = vmatpush1.msra.mxu0 %v35
    %320 = vmatprep.subr.mxu0 0.0
    %321 = vmatpush1.msra.mxu0 %v38
    %322 = vmatprep.subr.mxu0 0.0
    %323 = vmatpush1.msra.mxu0 %v41
    %324 = vmatprep.subr.mxu0 0.0
    %325 = vmatpush1.msra.mxu0 %v44
    %326 = vmatprep.subr.mxu0 0.0
    %327 = vmatpush1.msra.mxu0 %v47
    %328 = vmatprep.subr.mxu0 0.0
    %329 = vmatpush1.msra.mxu0 %v50
    %330 = vmatprep.subr.mxu0 0.0
    %331 = vmatpush1.msra.mxu0 %v53
    %332 = vmatprep.subr.mxu0 0.0
    %333 = vmatpush1.msra.mxu0 %v56
    %334 = vmatprep.subr.mxu0 0.0
    %335 = vmatpush1.msra.mxu0 %v59
    %336 = vmatprep.subr.mxu0 0.0
    %337 = vmatpush1.msra.mxu0 %v62
    %338 = vmatprep.subr.mxu0 0.0
    %339 = vmatpush1.msra.mxu0 %v65
    %340 = vmatprep.subr.mxu0 0.0
    %341 = vmatpush1.msra.mxu0 %v68
    %342 = vmatprep.subr.mxu0 0.0
    %343 = vmatpush1.msra.mxu0 %v71
    %344 = vmatprep.subr.mxu0 0.0
    %345 = vmatpush1.msra.mxu0 %v74
    %346 = vmatprep.subr.mxu0 0.0
    %347 = vmatpush1.msra.mxu0 %v77
    %348 = vmatprep.subr.mxu0 0.0
    %349 = vmatpush1.msra.mxu0 %v80
    %350 = vmatprep.subr.mxu0 0.0
    %351 = vmatpush1.msra.mxu0 %v83
    %352 = vmatprep.subr.mxu0 0.0
    %353 = vmatpush1.msra.mxu0 %v86
    %354 = vmatprep.subr.mxu0 0.0
    %355 = vmatpush1.msra.mxu0 %v89
    %356 = vmatprep.subr.mxu0 0.0
    %357 = vmatpush1.msra.mxu0 %v92
    %358 = vmatprep.subr.mxu0 0.0
    %359 = vmatpush1.msra.mxu0 %v95
    %360 = vmatprep.subr.mxu0 0.0
    %361 = vmatpush1.msra.mxu0 %v98
    %362 = vmatprep.subr.mxu0 0.0
    %363 = vmatpush1.msra.mxu0 %v101
    %364 = vmatprep.subr.mxu0 0.0
    %365 = vmatpush1.msra.mxu0 %v104
    %366 = vmatprep.subr.mxu0 0.0
    %367 = vmatpush1.msra.mxu0 %v107
    %368 = vmatprep.subr.mxu0 0.0
    %369 = vmatpush1.msra.mxu0 %v110
    %370 = vmatprep.subr.mxu0 0.0
    %371 = vmatpush1.msra.mxu0 %v113
    %372 = vmatprep.subr.mxu0 0.0
    %373 = vmatpush1.msra.mxu0 %v116
    %374 = vmatprep.subr.mxu0 0.0
    %375 = vmatpush1.msra.mxu0 %v119
    %376 = vmatprep.subr.mxu0 0.0
    %377 = vmatpush1.msra.mxu0 %v122
    %378 = vmatprep.subr.mxu0 0.0
    %379 = vmatpush1.msra.mxu0 %v125
    %380 = vmatprep.mubr.f32.mxu0 %v28
    %381 = vmatmul.mubr.f32.gmra.mrb[0].mxu0 %v27
    %v382 = vpop.f32.mrb[0].mxu0
    %v383 = vadd.f32 0.0, %v382
    %v384 = vpop.f32.mrb[0].mxu0
    %385 = vdwg.mxu0
    %386 = vmatprep.subr.mxu0 0.0
    %387 = vmatpush1.msra.mxu0 %v128
    %388 = vmatprep.subr.mxu0 0.0
    %389 = vmatpush1.msra.mxu0 %v131
    %390 = vmatprep.subr.mxu0 0.0
    %391 = vmatpush1.msra.mxu0 %v134
    %392 = vmatprep.subr.mxu0 0.0
    %393 = vmatpush1.msra.mxu0 %v137
    %394 = vmatprep.subr.mxu0 0.0
    %395 = vmatpush1.msra.mxu0 %v140
    %396 = vmatprep.subr.mxu0 0.0
    %397 = vmatpush1.msra.mxu0 %v143
    %398 = vmatprep.subr.mxu0 0.0
    %399 = vmatpush1.msra.mxu0 %v146
    %400 = vmatprep.subr.mxu0 0.0
    %401 = vmatpush1.msra.mxu0 %v149
    %402 = vmatprep.subr.mxu0 0.0
    %403 = vmatpush1.msra.mxu0 %v152
    %404 = vmatprep.subr.mxu0 0.0
    %405 = vmatpush1.msra.mxu0 %v155
    %406 = vmatprep.subr.mxu0 0.0
    %407 = vmatpush1.msra.mxu0 %v158
    %408 = vmatprep.subr.mxu0 0.0
    %409 = vmatpush1.msra.mxu0 %v161
    %410 = vmatprep.subr.mxu0 0.0
    %411 = vmatpush1.msra.mxu0 %v164
    %412 = vmatprep.subr.mxu0 0.0
    %413 = vmatpush1.msra.mxu0 %v167
    %414 = vmatprep.subr.mxu0 0.0
    %415 = vmatpush1.msra.mxu0 %v170
    %416 = vmatprep.subr.mxu0 0.0
    %417 = vmatpush1.msra.mxu0 %v173
    %418 = vmatprep.subr.mxu0 0.0
    %419 = vmatpush1.msra.mxu0 0.0
    %420 = vmatprep.subr.mxu0 0.0
    %421 = vmatpush1.msra.mxu0 0.0
    %422 = vmatprep.subr.mxu0 0.0
    %423 = vmatpush1.msra.mxu0 0.0
    %424 = vmatprep.subr.mxu0 0.0
    %425 = vmatpush1.msra.mxu0 0.0
    %426 = vmatprep.subr.mxu0 0.0
    %427 = vmatpush1.msra.mxu0 0.0
    %428 = vmatprep.subr.mxu0 0.0
    %429 = vmatpush1.msra.mxu0 0.0
    %430 = vmatprep.subr.mxu0 0.0
    %431 = vmatpush1.msra.mxu0 0.0
    %432 = vmatprep.subr.mxu0 0.0
    %433 = vmatpush1.msra.mxu0 0.0
    %434 = vmatprep.subr.mxu0 0.0
    %435 = vmatpush1.msra.mxu0 0.0
    %436 = vmatprep.subr.mxu0 0.0
    %437 = vmatpush1.msra.mxu0 0.0
    %438 = vmatprep.subr.mxu0 0.0
    %439 = vmatpush1.msra.mxu0 0.0
    %440 = vmatprep.subr.mxu0 0.0
    %441 = vmatpush1.msra.mxu0 0.0
    %442 = vmatprep.subr.mxu0 0.0
    %443 = vmatpush1.msra.mxu0 0.0
    %444 = vmatprep.subr.mxu0 0.0
    %445 = vmatpush1.msra.mxu0 0.0
    %446 = vmatprep.subr.mxu0 0.0
    %447 = vmatpush1.msra.mxu0 0.0
    %448 = vmatprep.subr.mxu0 0.0
    %449 = vmatpush1.msra.mxu0 0.0
    %450 = vmatprep.mubr.f32.mxu0 0.0
    %451 = vmatmul.mubr.f32.gmra.mrb[0].mxu0 %v29
    %v452 = vpop.f32.mrb[0].mxu0
    %v453 = vadd.f32 %v383, %v452
    %v454 = vpop.f32.mrb[0].mxu0
    %455 = vdwg.mxu0
    %v459 = vrot.slane %v312, 2
    %v460 = vrot.slane %v314, 2
    %v461 = vrot.slane %v453, 2
    %v465 = vmax.f32 %v312, %v459
    %v466 = vmax.f32 %v314, %v460
    %v467 = vmax.f32 %v453, %v461
    %v471 = vrot.slane %v465, 4
    %v472 = vrot.slane %v466, 4
    %v473 = vrot.slane %v467, 4
    %v477 = vmax.f32 %v465, %v471
    %v478 = vmax.f32 %v466, %v472
    %v479 = vmax.f32 %v467, %v473
    %v480 = vld [vmem:[%s2] sm:$0x7]
    %v482 = vlaneseq
    %v483 = vshrl.u32 %v482, 7
    %v484 = vsub.s32 0, %v483
    %v485 = vrot.slane %v480, %v484
    %v486 = vlaneseq
    %v487 = vshrl.u32 %v486, 7
    %v488 = vsub.s32 1, %v487
    %v489 = vrot.slane %v480, %v488
    %v490 = vlaneseq
    %v491 = vshrl.u32 %v490, 7
    %v492 = vsub.s32 2, %v491
    %v493 = vrot.slane %v480, %v492
    %v497 = vadd.f32 %v477, %v485
    %v498 = vadd.f32 %v478, %v489
    %v499 = vadd.f32 %v479, %v493
    %v500 = vmax.f32 %v497, 0.0
    %v501 = vmax.f32 %v498, 0.0
    %v502 = vmax.f32 %v499, 0.0
    %v503 = vld [vmem:[%s3] sm:$0xff]
    %v504 = vld [vmem:[%s3 + $0x8] sm:$0xff]
    %v505 = vld [vmem:[%s3 + $0x10] sm:$0xff]
    %v506 = vld [vmem:[%s3 + $0x18] sm:$0xff]
    %v507 = vld [vmem:[%s3 + $0x20] sm:$0xff]
    %v508 = vld [vmem:[%s3 + $0x28] sm:$0xff]
    %v509 = vld [vmem:[%s3 + $0x30] sm:$0xff]
    %v510 = vld [vmem:[%s3 + $0x38] sm:$0xff]
    %v511 = vld [vmem:[%s3 + $0x40] sm:$0xff]
    %v512 = vld [vmem:[%s3 + $0x48] sm:$0xff]
    %v513 = vld [vmem:[%s3 + $0x50] sm:$0xff]
    %v514 = vld [vmem:[%s3 + $0x58] sm:$0xff]
    %v515 = vld [vmem:[%s3 + $0x60] sm:$0xff]
    %v516 = vld [vmem:[%s3 + $0x68] sm:$0xff]
    %v517 = vld [vmem:[%s3 + $0x70] sm:$0xff]
    %v518 = vld [vmem:[%s3 + $0x78] sm:$0xff]
    %v519 = vld [vmem:[%s3 + $0x80] sm:$0xff]
    %v520 = vld [vmem:[%s3 + $0x88] sm:$0xff]
    %v521 = vld [vmem:[%s3 + $0x90] sm:$0xff]
    %v522 = vld [vmem:[%s3 + $0x98] sm:$0xff]
    %v523 = vld [vmem:[%s3 + $0xa0] sm:$0xff]
    %v524 = vld [vmem:[%s3 + $0xa8] sm:$0xff]
    %v525 = vld [vmem:[%s3 + $0xb0] sm:$0xff]
    %v526 = vld [vmem:[%s3 + $0xb8] sm:$0xff]
    %v527 = vld [vmem:[%s3 + $0xc0] sm:$0xff]
    %v528 = vld [vmem:[%s3 + $0xc8] sm:$0xff]
    %v529 = vld [vmem:[%s3 + $0xd0] sm:$0xff]
    %v530 = vld [vmem:[%s3 + $0xd8] sm:$0xff]
    %v531 = vld [vmem:[%s3 + $0xe0] sm:$0xff]
    %v532 = vld [vmem:[%s3 + $0xe8] sm:$0xff]
    %v533 = vld [vmem:[%s3 + $0xf0] sm:$0xff]
    %v534 = vld [vmem:[%s3 + $0xf8] sm:$0xff]
    %v535 = vld [vmem:[%s3 + $0x100] sm:$0xff]
    %v536 = vld [vmem:[%s3 + $0x108] sm:$0xff]
    %v537 = vld [vmem:[%s3 + $0x110] sm:$0xff]
    %v538 = vld [vmem:[%s3 + $0x118] sm:$0xff]
    %v539 = vld [vmem:[%s3 + $0x120] sm:$0xff]
    %v540 = vld [vmem:[%s3 + $0x128] sm:$0xff]
    %v541 = vld [vmem:[%s3 + $0x130] sm:$0xff]
    %v542 = vld [vmem:[%s3 + $0x138] sm:$0xff]
    %v543 = vld [vmem:[%s3 + $0x140] sm:$0xff]
    %v544 = vld [vmem:[%s3 + $0x148] sm:$0xff]
    %v545 = vld [vmem:[%s3 + $0x150] sm:$0xff]
    %v546 = vld [vmem:[%s3 + $0x158] sm:$0xff]
    %v547 = vld [vmem:[%s3 + $0x160] sm:$0xff]
    %v548 = vld [vmem:[%s3 + $0x168] sm:$0xff]
    %v549 = vld [vmem:[%s3 + $0x170] sm:$0xff]
    %v550 = vld [vmem:[%s3 + $0x178] sm:$0xff]
    %v551 = vld [vmem:[%s4] sm:$0x1]
    %v553 = vlaneseq
    %v554 = vshrl.u32 %v553, 7
    %v555 = vsub.s32 0, %v554
    %v556 = vrot.slane %v551, %v555
    %558 = vmatprep.subr.mxu0 0.0
    %559 = vmatpush1.msra.mxu0 %v503
    %560 = vmatprep.subr.mxu0 0.0
    %561 = vmatpush1.msra.mxu0 %v504
    %562 = vmatprep.subr.mxu0 0.0
    %563 = vmatpush1.msra.mxu0 %v505
    %564 = vmatprep.subr.mxu0 0.0
    %565 = vmatpush1.msra.mxu0 %v506
    %566 = vmatprep.subr.mxu0 0.0
    %567 = vmatpush1.msra.mxu0 %v507
    %568 = vmatprep.subr.mxu0 0.0
    %569 = vmatpush1.msra.mxu0 %v508
    %570 = vmatprep.subr.mxu0 0.0
    %571 = vmatpush1.msra.mxu0 %v509
    %572 = vmatprep.subr.mxu0 0.0
    %573 = vmatpush1.msra.mxu0 %v510
    %574 = vmatprep.subr.mxu0 0.0
    %575 = vmatpush1.msra.mxu0 %v511
    %576 = vmatprep.subr.mxu0 0.0
    %577 = vmatpush1.msra.mxu0 %v512
    %578 = vmatprep.subr.mxu0 0.0
    %579 = vmatpush1.msra.mxu0 %v513
    %580 = vmatprep.subr.mxu0 0.0
    %581 = vmatpush1.msra.mxu0 %v514
    %582 = vmatprep.subr.mxu0 0.0
    %583 = vmatpush1.msra.mxu0 %v515
    %584 = vmatprep.subr.mxu0 0.0
    %585 = vmatpush1.msra.mxu0 %v516
    %586 = vmatprep.subr.mxu0 0.0
    %587 = vmatpush1.msra.mxu0 %v517
    %588 = vmatprep.subr.mxu0 0.0
    %589 = vmatpush1.msra.mxu0 %v518
    %590 = vmatprep.subr.mxu0 0.0
    %591 = vmatpush1.msra.mxu0 %v519
    %592 = vmatprep.subr.mxu0 0.0
    %593 = vmatpush1.msra.mxu0 %v520
    %594 = vmatprep.subr.mxu0 0.0
    %595 = vmatpush1.msra.mxu0 %v521
    %596 = vmatprep.subr.mxu0 0.0
    %597 = vmatpush1.msra.mxu0 %v522
    %598 = vmatprep.subr.mxu0 0.0
    %599 = vmatpush1.msra.mxu0 %v523
    %600 = vmatprep.subr.mxu0 0.0
    %601 = vmatpush1.msra.mxu0 %v524
    %602 = vmatprep.subr.mxu0 0.0
    %603 = vmatpush1.msra.mxu0 %v525
    %604 = vmatprep.subr.mxu0 0.0
    %605 = vmatpush1.msra.mxu0 %v526
    %606 = vmatprep.subr.mxu0 0.0
    %607 = vmatpush1.msra.mxu0 %v527
    %608 = vmatprep.subr.mxu0 0.0
    %609 = vmatpush1.msra.mxu0 %v528
    %610 = vmatprep.subr.mxu0 0.0
    %611 = vmatpush1.msra.mxu0 %v529
    %612 = vmatprep.subr.mxu0 0.0
    %613 = vmatpush1.msra.mxu0 %v530
    %614 = vmatprep.subr.mxu0 0.0
    %615 = vmatpush1.msra.mxu0 %v531
    %616 = vmatprep.subr.mxu0 0.0
    %617 = vmatpush1.msra.mxu0 %v532
    %618 = vmatprep.subr.mxu0 0.0
    %619 = vmatpush1.msra.mxu0 %v533
    %620 = vmatprep.subr.mxu0 0.0
    %621 = vmatpush1.msra.mxu0 %v534
    %622 = vmatprep.mubr.f32.mxu0 %v501
    %623 = vmatmul.mubr.f32.gmra.mrb[0].mxu0 %v500
    %v624 = vpop.f32.mrb[0].mxu0
    %v625 = vadd.f32 %v556, %v624
    %v626 = vpop.f32.mrb[0].mxu0
    %627 = vdwg.mxu0
    %628 = vmatprep.subr.mxu0 0.0
    %629 = vmatpush1.msra.mxu0 %v535
    %630 = vmatprep.subr.mxu0 0.0
    %631 = vmatpush1.msra.mxu0 %v536
    %632 = vmatprep.subr.mxu0 0.0
    %633 = vmatpush1.msra.mxu0 %v537
    %634 = vmatprep.subr.mxu0 0.0
    %635 = vmatpush1.msra.mxu0 %v538
    %636 = vmatprep.subr.mxu0 0.0
    %637 = vmatpush1.msra.mxu0 %v539
    %638 = vmatprep.subr.mxu0 0.0
    %639 = vmatpush1.msra.mxu0 %v540
    %640 = vmatprep.subr.mxu0 0.0
    %641 = vmatpush1.msra.mxu0 %v541
    %642 = vmatprep.subr.mxu0 0.0
    %643 = vmatpush1.msra.mxu0 %v542
    %644 = vmatprep.subr.mxu0 0.0
    %645 = vmatpush1.msra.mxu0 %v543
    %646 = vmatprep.subr.mxu0 0.0
    %647 = vmatpush1.msra.mxu0 %v544
    %648 = vmatprep.subr.mxu0 0.0
    %649 = vmatpush1.msra.mxu0 %v545
    %650 = vmatprep.subr.mxu0 0.0
    %651 = vmatpush1.msra.mxu0 %v546
    %652 = vmatprep.subr.mxu0 0.0
    %653 = vmatpush1.msra.mxu0 %v547
    %654 = vmatprep.subr.mxu0 0.0
    %655 = vmatpush1.msra.mxu0 %v548
    %656 = vmatprep.subr.mxu0 0.0
    %657 = vmatpush1.msra.mxu0 %v549
    %658 = vmatprep.subr.mxu0 0.0
    %659 = vmatpush1.msra.mxu0 %v550
    %660 = vmatprep.subr.mxu0 0.0
    %661 = vmatpush1.msra.mxu0 0.0
    %662 = vmatprep.subr.mxu0 0.0
    %663 = vmatpush1.msra.mxu0 0.0
    %664 = vmatprep.subr.mxu0 0.0
    %665 = vmatpush1.msra.mxu0 0.0
    %666 = vmatprep.subr.mxu0 0.0
    %667 = vmatpush1.msra.mxu0 0.0
    %668 = vmatprep.subr.mxu0 0.0
    %669 = vmatpush1.msra.mxu0 0.0
    %670 = vmatprep.subr.mxu0 0.0
    %671 = vmatpush1.msra.mxu0 0.0
    %672 = vmatprep.subr.mxu0 0.0
    %673 = vmatpush1.msra.mxu0 0.0
    %674 = vmatprep.subr.mxu0 0.0
    %675 = vmatpush1.msra.mxu0 0.0
    %676 = vmatprep.subr.mxu0 0.0
    %677 = vmatpush1.msra.mxu0 0.0
    %678 = vmatprep.subr.mxu0 0.0
    %679 = vmatpush1.msra.mxu0 0.0
    %680 = vmatprep.subr.mxu0 0.0
    %681 = vmatpush1.msra.mxu0 0.0
    %682 = vmatprep.subr.mxu0 0.0
    %683 = vmatpush1.msra.mxu0 0.0
    %684 = vmatprep.subr.mxu0 0.0
    %685 = vmatpush1.msra.mxu0 0.0
    %686 = vmatprep.subr.mxu0 0.0
    %687 = vmatpush1.msra.mxu0 0.0
    %688 = vmatprep.subr.mxu0 0.0
    %689 = vmatpush1.msra.mxu0 0.0
    %690 = vmatprep.subr.mxu0 0.0
    %691 = vmatpush1.msra.mxu0 0.0
    %692 = vmatprep.mubr.f32.mxu0 0.0
    %693 = vmatmul.mubr.f32.gmra.mrb[0].mxu0 %v502
    %v694 = vpop.f32.mrb[0].mxu0
    %v695 = vadd.f32 %v625, %v694
    %v696 = vpop.f32.mrb[0].mxu0
    %697 = vdwg.mxu0
    %v698 = vmax.f32 %v695, 0.0
    %v699 = vld [vmem:[%s5] sm:$0xff]
    %v700 = vld [vmem:[%s5 + $0x8] sm:$0xff]
    %v701 = vld [vmem:[%s5 + $0x10] sm:$0xff]
    %v702 = vld [vmem:[%s5 + $0x18] sm:$0xff]
    %v703 = vld [vmem:[%s5 + $0x20] sm:$0xff]
    %v704 = vld [vmem:[%s5 + $0x28] sm:$0xff]
    %v705 = vld [vmem:[%s5 + $0x30] sm:$0xff]
    %v706 = vld [vmem:[%s5 + $0x38] sm:$0xff]
    %v707 = vld [vmem:[%s5 + $0x40] sm:$0xff]
    %v708 = vld [vmem:[%s5 + $0x48] sm:$0xff]
    %v709 = vld [vmem:[%s5 + $0x50] sm:$0xff]
    %v710 = vld [vmem:[%s5 + $0x58] sm:$0xff]
    %v711 = vld [vmem:[%s5 + $0x60] sm:$0xff]
    %v712 = vld [vmem:[%s5 + $0x68] sm:$0xff]
    %v713 = vld [vmem:[%s5 + $0x70] sm:$0xff]
    %v714 = vld [vmem:[%s5 + $0x78] sm:$0xff]
    %v715 = vld [vmem:[%s6] sm:$0x1]
    %v717 = vlaneseq
    %v718 = vshrl.u32 %v717, 7
    %v719 = vsub.s32 0, %v718
    %v720 = vrot.slane %v715, %v719
    %722 = vmatprep.subr.mxu0 0.0
    %723 = vmatpush1.msra.mxu0 %v699
    %724 = vmatprep.subr.mxu0 0.0
    %725 = vmatpush1.msra.mxu0 %v700
    %726 = vmatprep.subr.mxu0 0.0
    %727 = vmatpush1.msra.mxu0 %v701
    %728 = vmatprep.subr.mxu0 0.0
    %729 = vmatpush1.msra.mxu0 %v702
    %730 = vmatprep.subr.mxu0 0.0
    %731 = vmatpush1.msra.mxu0 %v703
    %732 = vmatprep.subr.mxu0 0.0
    %733 = vmatpush1.msra.mxu0 %v704
    %734 = vmatprep.subr.mxu0 0.0
    %735 = vmatpush1.msra.mxu0 %v705
    %736 = vmatprep.subr.mxu0 0.0
    %737 = vmatpush1.msra.mxu0 %v706
    %738 = vmatprep.subr.mxu0 0.0
    %739 = vmatpush1.msra.mxu0 %v707
    %740 = vmatprep.subr.mxu0 0.0
    %741 = vmatpush1.msra.mxu0 %v708
    %742 = vmatprep.subr.mxu0 0.0
    %743 = vmatpush1.msra.mxu0 %v709
    %744 = vmatprep.subr.mxu0 0.0
    %745 = vmatpush1.msra.mxu0 %v710
    %746 = vmatprep.subr.mxu0 0.0
    %747 = vmatpush1.msra.mxu0 %v711
    %748 = vmatprep.subr.mxu0 0.0
    %749 = vmatpush1.msra.mxu0 %v712
    %750 = vmatprep.subr.mxu0 0.0
    %751 = vmatpush1.msra.mxu0 %v713
    %752 = vmatprep.subr.mxu0 0.0
    %753 = vmatpush1.msra.mxu0 %v714
    %754 = vmatprep.subr.mxu0 0.0
    %755 = vmatpush1.msra.mxu0 0.0
    %756 = vmatprep.subr.mxu0 0.0
    %757 = vmatpush1.msra.mxu0 0.0
    %758 = vmatprep.subr.mxu0 0.0
    %759 = vmatpush1.msra.mxu0 0.0
    %760 = vmatprep.subr.mxu0 0.0
    %761 = vmatpush1.msra.mxu0 0.0
    %762 = vmatprep.subr.mxu0 0.0
    %763 = vmatpush1.msra.mxu0 0.0
    %764 = vmatprep.subr.mxu0 0.0
    %765 = vmatpush1.msra.mxu0 0.0
    %766 = vmatprep.subr.mxu0 0.0
    %767 = vmatpush1.msra.mxu0 0.0
    %768 = vmatprep.subr.mxu0 0.0
    %769 = vmatpush1.msra.mxu0 0.0
    %770 = vmatprep.subr.mxu0 0.0
    %771 = vmatpush1.msra.mxu0 0.0
    %772 = vmatprep.subr.mxu0 0.0
    %773 = vmatpush1.msra.mxu0 0.0
    %774 = vmatprep.subr.mxu0 0.0
    %775 = vmatpush1.msra.mxu0 0.0
    %776 = vmatprep.subr.mxu0 0.0
    %777 = vmatpush1.msra.mxu0 0.0
    %778 = vmatprep.subr.mxu0 0.0
    %779 = vmatpush1.msra.mxu0 0.0
    %780 = vmatprep.subr.mxu0 0.0
    %781 = vmatpush1.msra.mxu0 0.0
    %782 = vmatprep.subr.mxu0 0.0
    %783 = vmatpush1.msra.mxu0 0.0
    %784 = vmatprep.subr.mxu0 0.0
    %785 = vmatpush1.msra.mxu0 0.0
    %786 = vmatprep.mubr.f32.mxu0 0.0
    %787 = vmatmul.mubr.f32.gmra.mrb[0].mxu0 %v698
    %v788 = vpop.f32.mrb[0].mxu0
    %v789 = vadd.f32 %v720, %v788
    %v790 = vpop.f32.mrb[0].mxu0
    %791 = vdwg.mxu0
    %792 = vst [vmem:[#allocation2] sm:$0x3] %v789
    // Predicated region
    $region30: #{net3_forward.1} parent=1 // pred_check
      _
    $region31: #{net3_forward.1} parent=1 // pred_check_branch
      %794 = sbr.rel (0) target = $region33
    $region32: #{net3_forward.1} parent=1 // pred_region
      %s796 = ssub.s32 32, 32
      %797 = vsyncadd [#allocation3], %s796
      %s799 = sshll.u32 [#allocation2], 4
      %s800 = int_to_ptr.vmem [resolvable:$true] %s799
      %802 = dma.vmem_to_hbm [thread:$0]  %s800, 32, %s7, [#allocation3]
    $region33: #{net3_forward.1} parent=1 // pred_fallthru
      _
    // Predicated region
    $region34: #{net3_forward.1} parent=1 // pred_check
      _
    $region35: #{net3_forward.1} parent=1 // pred_check_branch
      %804 = sbr.rel (0) target = $region37
    $region36: #{net3_forward.1} parent=1 // pred_region
      %805 = dma.done [#allocation3], 32
    $region37: #{net3_forward.1} parent=1 // pred_fallthru
      _
    %806 = vsyncpa [#allocation3], 1

</llo_original>
